<compile_context>
chip_gen: v6e
topology: v6e:2x2x1
jax: 0.10.0
libtpu: 0.0.40
codegen_flags: <defaults>
</compile_context>

<pallas_src>
import functools

import jax
import jax.numpy as jnp
from jax.experimental import pallas as pl
from jax.experimental.pallas import tpu as pltpu


def _value_head_kernel_smem_bias(x_ref, w_ref, b_ref, o_ref):
    # x_ref: [TM, H] VMEM; w_ref: [H, 1] VMEM; b_ref: [1] SMEM; o_ref: [TM, 1]
    y = jnp.dot(x_ref[...], w_ref[...], preferred_element_type=jnp.float32)
    y = y + b_ref[0]                       # scalar bias (C == 1 path)
    o_ref[...] = jnp.tanh(y).astype(o_ref.dtype)


def _value_head_kernel_vmem_bias(x_ref, w_ref, b_ref, o_ref):
    # x_ref: [TM, H] VMEM; w_ref: [H, C] VMEM; b_ref: [1, C] VMEM; o_ref: [TM, C]
    y = jnp.dot(x_ref[...], w_ref[...], preferred_element_type=jnp.float32)
    y = y + b_ref[...].astype(jnp.float32)
    o_ref[...] = jnp.tanh(y).astype(o_ref.dtype)


def _round_up(x, m):
    return ((x + m - 1) // m) * m


@functools.partial(jax.jit, static_argnames=("tile_m",))
def value_head_forward(hidden_states, weight, bias, *, tile_m=1024):
    """hidden_states: [B, S, H]; weight: [H, C]; bias: [C] -> [B, S, C].

    tile_m=1024 keeps double-buffered activation tiles at ~2*1024*H*4 bytes
    (e.g. 20 MiB at H=2560 f32), which fits the raised 48 MiB scoped-VMEM
    budget on v5e/v6e and leaves headroom on v7x's 64 MiB physical VMEM.
    """
    B, S, H = hidden_states.shape
    Hw, C = weight.shape
    assert Hw == H, "weight must be [hidden, num_labels]"
    M = B * S

    # Tile the token axis; sublane dim of the block must be a multiple of 8.
    tm = _round_up(min(tile_m, _round_up(M, 8)), 8)
    m_pad = _round_up(M, tm)

    x2d = hidden_states.reshape(M, H)
    if m_pad != M:
        # Pad with zeros so every block is full; padded rows are sliced off.
        x2d = jnp.pad(x2d, ((0, m_pad - M), (0, 0)))

    grid = (m_pad // tm,)

    x_itemsize = jnp.dtype(hidden_states.dtype).itemsize
    w_itemsize = jnp.dtype(weight.dtype).itemsize
    cost = pl.CostEstimate(
        flops=2 * M * H * C,
        transcendentals=M * C,
        bytes_accessed=M * H * x_itemsize + H * C * w_itemsize + M * C * x_itemsize,
    )

    x_spec = pl.BlockSpec((tm, H), lambda i: (i, 0))
    w_spec = pl.BlockSpec((H, C), lambda i: (0, 0))      # resident across steps
    o_spec = pl.BlockSpec((tm, C), lambda i: (i, 0))

    if C == 1:
        kernel = _value_head_kernel_smem_bias
        b_arg = bias.reshape(C).astype(jnp.float32)
        b_spec = pl.BlockSpec(memory_space=pltpu.MemorySpace.SMEM)
    else:
        kernel = _value_head_kernel_vmem_bias
        b_arg = bias.reshape(1, C)
        b_spec = pl.BlockSpec((1, C), lambda i: (0, 0))

    out2d = pl.pallas_call(
        kernel,
        out_shape=jax.ShapeDtypeStruct((m_pad, C), hidden_states.dtype),
        grid_spec=pltpu.PrefetchScalarGridSpec(
            num_scalar_prefetch=0,
            grid=grid,
            in_specs=[x_spec, w_spec, b_spec],
            out_specs=o_spec,
        ),
        compiler_params=pltpu.CompilerParams(
            dimension_semantics=("parallel",),     # shard row tiles across TCs
            vmem_limit_bytes=48 * 1024 * 1024,
        ),
        cost_estimate=cost,
    )(x2d, weight, b_arg)

    return out2d[:M].reshape(B, S, C)


if __name__ == "__main__":
    # Small shapes consistent with the module: batch=2, seq=8, hidden=32,
    # num_labels=1 (one scalar value per token).
    B, S, H, C = 2, 8, 32, 1

    key = jax.random.PRNGKey(0)
    k_x, k_w, k_b = jax.random.split(key, 3)

    hidden_states = jax.random.normal(k_x, (B, S, H), dtype=jnp.float32)
    # Deterministic init mimicking nn.Linear (uniform in +/- 1/sqrt(H)).
    bound = 1.0 / (H ** 0.5)
    weight = jax.random.uniform(k_w, (H, C), minval=-bound, maxval=bound,
                                dtype=jnp.float32)
    bias = jax.random.uniform(k_b, (C,), minval=-bound, maxval=bound,
                              dtype=jnp.float32)

    out = value_head_forward(hidden_states, weight, bias)
    out = jax.block_until_ready(out)

    # Reference check against plain JAX (dropouts are Identity in eval).
    ref = jnp.tanh(jnp.einsum("bsh,hc->bsc", hidden_states, weight) + bias)
    assert out.shape == (B, S, C)
    assert jnp.allclose(out, ref, atol=1e-5, rtol=1e-5)

    print("KERNEL_OK")
</pallas_src>

<mosaic_0001>
module attributes {stable_mosaic.version = 11 : i64} {
  func.func @_value_head_kernel_smem_bias(%arg0: i32, %arg1: memref<16x32xf32, #tpu.memory_space<vmem>>, %arg2: memref<32x1xf32, #tpu.memory_space<vmem>>, %arg3: memref<1xf32, #tpu.memory_space<smem>>, %arg4: memref<16x1xf32, #tpu.memory_space<vmem>>) attributes {dimension_semantics = [#tpu.dimension_semantics<parallel>], iteration_bounds = array<i64: 1>, scalar_prefetch = 0 : i64, scratch_operands = 0 : i64, tpu.core_type = #tpu.core_type<tc>, window_params = [{transform_indices = @transform_0, window_bounds = array<i64: 16, 32>}, {pipeline_mode = #tpu.pipeline_mode<synchronous>, transform_indices = @transform_1, window_bounds = array<i64: 32, 1>}, {transform_indices = @transform_2, window_bounds = array<i64: 1>}, {transform_indices = @transform_3, window_bounds = array<i64: 16, 1>}]} {
    %c0 = arith.constant 0 : index
    %c0_0 = arith.constant 0 : index
    %0 = vector.load %arg1[%c0, %c0_0] : memref<16x32xf32, #tpu.memory_space<vmem>>, vector<16x32xf32>
    %c0_1 = arith.constant 0 : index
    %c0_2 = arith.constant 0 : index
    %1 = vector.load %arg2[%c0_1, %c0_2] : memref<32x1xf32, #tpu.memory_space<vmem>>, vector<32x1xf32>
    %cst = arith.constant dense<0.000000e+00> : vector<16x1xf32>
    %2 = tpu.matmul %0, %1, %cst {dimension_numbers = #tpu.dot_dimension_numbers<[1], [0], [0], [1], [0, 0, 1, 1], [], []>} : vector<16x32xf32>, vector<32x1xf32>, vector<16x1xf32> -> vector<16x1xf32>
    %c0_3 = arith.constant 0 : index
    %3 = memref.load %arg3[%c0_3] : memref<1xf32, #tpu.memory_space<smem>>
    %4 = vector.broadcast %3 : f32 to vector<16x1xf32>
    %5 = arith.addf %2, %4 : vector<16x1xf32>
    %6 = math.tanh %5 : vector<16x1xf32>
    %c0_4 = arith.constant 0 : index
    %c0_5 = arith.constant 0 : index
    %7 = vector.load %arg4[%c0_4, %c0_5] : memref<16x1xf32, #tpu.memory_space<vmem>>, vector<16x1xf32>
    tpu.vector_store %arg4[%c0_4, %c0_5], %6 {strides = array<i32>} : memref<16x1xf32, #tpu.memory_space<vmem>>, vector<16x1xf32>,
    return
  }
  func.func @transform_0(%arg0: i32) -> (i32, i32) {
    %c0_i32 = arith.constant 0 : i32
    %c0_i32_0 = arith.constant 0 : i32
    return %arg0, %c0_i32 : i32, i32
  }
  func.func @transform_1(%arg0: i32) -> (i32, i32) {
    %c0_i32 = arith.constant 0 : i32
    %c0_i32_0 = arith.constant 0 : i32
    %c0_i32_1 = arith.constant 0 : i32
    return %c0_i32, %c0_i32_0 : i32, i32
  }
  func.func @transform_2(%arg0: i32) -> i32 {
    %c0_i32 = arith.constant 0 : i32
    %c0_i32_0 = arith.constant 0 : i32
    return %c0_i32 : i32
  }
  func.func @transform_3(%arg0: i32) -> (i32, i32) {
    %c0_i32 = arith.constant 0 : i32
    %c0_i32_0 = arith.constant 0 : i32
    return %arg0, %c0_i32 : i32, i32
  }
}

</mosaic_0001>

<llo_original>
// kernel: value_head_forward.1
$region0: #{value_head_forward.1}
  #allocation0 [shape = 'u32[]', space=smem, size = 0x4, offset = 0x4, fixed_abs, tag = 'smem constant byte address 0x4 - core index']
  #allocation1 [shape = 'u32[144,128]{1,0:T(1,128)}', space=vmem, size = 0x12000, scoped, tag = 'internal scratch']
  #allocation2 [shape = 'f32[1]{0:T(128)S(6)}', space=smem, size = 0x200, scoped, tag = 'scoped memory for value_head_forward.1']
  %s0 = inlined_call_operand.vmem [shape: f32[16,32], index: 0, kind: input, shape index: {}]
  %s1 = inlined_call_operand.vmem [shape: f32[32,1], index: 1, kind: input, shape index: {}]
  %s2 = inlined_call_operand.<no memory space> [shape: f32[1], index: 2, kind: input, shape index: {}]
  %s3 = inlined_call_operand.vmem [shape: f32[16,1], index: 3, kind: output, shape index: {}]
  %s4 = sld [smem:[#allocation0]]
  $region22: #{value_head_forward.1} parent=0
    _
  %s6 = ssub.s32 1, %s4
  %s7 = scalar_select 0, %s6, %s4
  %8 = sst [smem:[#allocation2]] %s2
  // Predicated region
  $region2: #{value_head_forward.1} parent=0 // pred_check
    _
  $region3: #{value_head_forward.1} parent=0 // pred_check_branch
    %10 = sbr.rel (0) target = $region5
  $region4: #{value_head_forward.1} parent=0 // pred_region
    _
  $region5: #{value_head_forward.1} parent=0 // pred_fallthru
    _
  // Predicated region
  $region6: #{value_head_forward.1} parent=0 // pred_check
    _
  $region7: #{value_head_forward.1} parent=0 // pred_check_branch
    %12 = sbr.rel (0) target = $region9
  $region8: #{value_head_forward.1} parent=0 // pred_region
    _
  $region9: #{value_head_forward.1} parent=0 // pred_fallthru
    _
  // Predicated region
  $region10: #{value_head_forward.1} parent=0 // pred_check
    _
  $region11: #{value_head_forward.1} parent=0 // pred_check_branch
    %14 = sbr.rel (0) target = $region13
  $region12: #{value_head_forward.1} parent=0 // pred_region
    _
  $region13: #{value_head_forward.1} parent=0 // pred_fallthru
    _
  %v15 = vld [vmem:[%s0] sm:$0xff]
  %v16 = vld [vmem:[%s0 + $0x8] sm:$0xff]
  %v17 = vld [vmem:[%s1] sm:$0xff]
  %v18 = vld [vmem:[%s1 + $0x8] sm:$0xff]
  %v19 = vld [vmem:[%s1 + $0x10] sm:$0xff]
  %v20 = vld [vmem:[%s1 + $0x18] sm:$0xff]
  %s21 = sld [smem:[#allocation2]]
  %v22 = vstv %s21
  %vm23 = vcmask 261120
  %v25 = vsel %vm23, %v15, 0
  %v28 = vsel %vm23, %v16, 0
  %30 = vmatprep.subr.mxu0 0.0
  %31 = vmatpush1.msra.mxu0 0.0
  %32 = vmatprep.subr.mxu0 0.0
  %33 = vmatpush1.msra.mxu0 0.0
  %34 = vmatprep.subr.mxu0 0.0
  %35 = vmatpush1.msra.mxu0 0.0
  %36 = vmatprep.subr.mxu0 0.0
  %37 = vmatpush1.msra.mxu0 0.0
  %38 = vmatprep.subr.mxu0 0.0
  %39 = vmatpush1.msra.mxu0 0.0
  %40 = vmatprep.subr.mxu0 0.0
  %41 = vmatpush1.msra.mxu0 0.0
  %42 = vmatprep.subr.mxu0 0.0
  %43 = vmatpush1.msra.mxu0 0.0
  %44 = vmatprep.subr.mxu0 0.0
  %45 = vmatpush1.msra.mxu0 0.0
  %46 = vmatprep.subr.mxu0 0.0
  %47 = vmatpush1.msra.mxu0 0.0
  %48 = vmatprep.subr.mxu0 0.0
  %49 = vmatpush1.msra.mxu0 0.0
  %50 = vmatprep.subr.mxu0 0.0
  %51 = vmatpush1.msra.mxu0 0.0
  %52 = vmatprep.subr.mxu0 0.0
  %53 = vmatpush1.msra.mxu0 0.0
  %54 = vmatprep.subr.mxu0 0.0
  %55 = vmatpush1.msra.mxu0 %v20
  %56 = vmatprep.subr.mxu0 0.0
  %57 = vmatpush1.msra.mxu0 %v19
  %58 = vmatprep.subr.mxu0 0.0
  %59 = vmatpush1.msra.mxu0 %v18
  %60 = vmatprep.subr.mxu0 0.0
  %61 = vmatpush1.msra.mxu0 %v17
  %62 = vmatprep.subr.mxu0 0.0
  %63 = vmatpush2.msra.mxu0 0.0
  %64 = vmatprep.subr.mxu0 0.0
  %65 = vmatpush2.msra.mxu0 0.0
  %66 = vmatprep.subr.mxu0 0.0
  %67 = vmatpush2.msra.mxu0 0.0
  %68 = vmatprep.subr.mxu0 0.0
  %69 = vmatpush2.msra.mxu0 0.0
  %70 = vmatprep.subr.mxu0 0.0
  %71 = vmatpush2.msra.mxu0 0.0
  %72 = vmatprep.subr.mxu0 0.0
  %73 = vmatpush2.msra.mxu0 0.0
  %74 = vmatprep.subr.mxu0 0.0
  %75 = vmatpush2.msra.mxu0 0.0
  %76 = vmatprep.subr.mxu0 0.0
  %77 = vmatpush2.msra.mxu0 0.0
  %78 = vmatprep.subr.mxu0 0.0
  %79 = vmatpush2.msra.mxu0 0.0
  %80 = vmatprep.subr.mxu0 0.0
  %81 = vmatpush2.msra.mxu0 0.0
  %82 = vmatprep.subr.mxu0 0.0
  %83 = vmatpush2.msra.mxu0 0.0
  %84 = vmatprep.subr.mxu0 0.0
  %85 = vmatpush2.msra.mxu0 0.0
  %86 = vmatprep.subr.mxu0 0.0
  %87 = vmatpush2.msra.mxu0 0.0
  %88 = vmatprep.subr.mxu0 0.0
  %89 = vmatpush2.msra.mxu0 0.0
  %90 = vmatprep.subr.mxu0 0.0
  %91 = vmatpush2.msra.mxu0 0.0
  %92 = vmatprep.subr.mxu0 0.0
  %93 = vmatpush2.msra.mxu0 0.0
  %94 = vmatprep.mubr.f32.mxu0 0.0
  %95 = vmatmul.mubr.f32.gmra.mxu0 %v25
  %v96 = vpop.f32.mrf.mxu0
  %v97 = vadd.f32 %v22, %v96
  %v98 = vpop.f32.mrf.mxu0
  %99 = vmatprep.mubr.f32.mxu0 0.0
  %100 = vmatmul.mubr.f32.gmra.mxu0 %v28
  %v101 = vpop.f32.mrf.mxu0
  %v102 = vadd.f32 %v22, %v101
  %v103 = vpop.f32.mrf.mxu0
  %104 = vdwg.mxu0
  %v105 = vtanh.pop %v97
  %v106 = vtanh.pop %v102
  %vm107 = vcmask 7168
  %108 = vst.msk [vmem:[%s3] sm:$0xff] %vm107, %v105
  %109 = vst.msk [vmem:[%s3 + $0x8] sm:$0xff] %vm107, %v106
  // Predicated region
  $region14: #{value_head_forward.1} parent=0 // pred_check
    _
  $region15: #{value_head_forward.1} parent=0 // pred_check_branch
    %111 = sbr.rel (0) target = $region17
  $region16: #{value_head_forward.1} parent=0 // pred_region
    _
  $region17: #{value_head_forward.1} parent=0 // pred_fallthru
    _
  // Predicated region
  $region18: #{value_head_forward.1} parent=0 // pred_check
    _
  $region19: #{value_head_forward.1} parent=0 // pred_check_branch
    %113 = sbr.rel (0) target = $region21
  $region20: #{value_head_forward.1} parent=0 // pred_region
    _
  $region21: #{value_head_forward.1} parent=0 // pred_fallthru
    _

</llo_original>
